<compile_context>
chip_gen: v7x
topology: tpu7x:2x2x1
jax: 0.10.0
libtpu: 0.0.40
codegen_flags: <defaults>
</compile_context>

<pallas_src>
import functools

import jax
import jax.numpy as jnp
from jax.experimental import pallas as pl
from jax.experimental.pallas import tpu as pltpu


def _round_up(x, m):
    return (x + m - 1) // m * m


def _generator_kernel(x_ref, w1_ref, b1_ref, w2_ref, b2_ref, out_ref):
    """One batch tile of sigmoid(relu(x @ W1 + b1) @ W2 + b2)."""
    x = x_ref[...].astype(jnp.bfloat16)                       # (TB, Z) in-kernel cast
    # Layer 1: Linear(z, 128) + ReLU. bf16 MXU inputs, f32 accumulation.
    h = jnp.dot(x, w1_ref[...], preferred_element_type=jnp.float32)
    h = jnp.maximum(h + b1_ref[...], 0.0)                     # bias + ReLU (VPU)
    # Layer 2: Linear(128, OUT) + Sigmoid.
    h = h.astype(jnp.bfloat16)
    o = jnp.dot(h, w2_ref[...], preferred_element_type=jnp.float32)
    o = o + b2_ref[...]
    # sigmoid(o) == 0.5 * (tanh(0.5 * o) + 1): one EUP push per vreg instead
    # of exp + full-precision divide.
    out_ref[...] = (0.5 * (jnp.tanh(0.5 * o) + 1.0)).astype(out_ref.dtype)


def prepare_generator_params(w1, b1, w2, b2):
    """One-time pad + cast of the Generator parameters (hoisted out of the
    per-call forward).

    w1: (Z, H), b1: (1, H), w2: (H, OUT), b2: (1, OUT), all f32.
    Returns (w1p, b1p, w2p, b2p): hidden dim lane-aligned, matmul weights bf16,
    biases f32.  Padded hidden units are exact zeros, so the math is unchanged.
    """
    Z, H = w1.shape
    OUT = w2.shape[1]
    Hp = _round_up(H, 128)
    bf16, f32 = jnp.bfloat16, jnp.float32
    w1p = jnp.zeros((Z, Hp), bf16).at[:, :H].set(w1.astype(bf16))
    b1p = jnp.zeros((1, Hp), f32).at[:, :H].set(b1.astype(f32))
    w2p = jnp.zeros((Hp, OUT), bf16).at[:H, :].set(w2.astype(bf16))
    b2p = b2.astype(f32).reshape(1, OUT)
    return w1p, b1p, w2p, b2p


@functools.partial(jax.jit, static_argnames=("batch_tile", "out_dtype"))
def generator_forward(x, w1p, b1p, w2p, b2p, *, batch_tile=None,
                      out_dtype=jnp.float32):
    """x: (B, Z) f32; (w1p, b1p, w2p, b2p) from prepare_generator_params().
    Returns (B, OUT) = sigmoid(relu(x @ W1 + b1) @ W2 + b2), same math as the
    PyTorch Generator forward (bf16 matmul inputs, f32 accumulation)."""
    B, Z = x.shape
    Hp = w1p.shape[1]
    OUT = w2p.shape[1]

    if batch_tile is None:
        if B <= 16:
            batch_tile = _round_up(B, 8)
        else:
            # >= 2 grid steps so the "parallel" batch axis shards across both
            # TensorCores on v7x; cap at 1024 rows to amortize the per-step
            # overhead while staying well under scoped VMEM on v5e/v6e/v7x.
            batch_tile = min(1024, _round_up(pl.cdiv(B, 2), 8))
    Bp = _round_up(B, batch_tile)

    # Row padding only when B does not divide into tiles (no-op otherwise).
    xp = x if Bp == B else jnp.pad(x, ((0, Bp - B), (0, 0)))

    out = pl.pallas_call(
        _generator_kernel,
        out_shape=jax.ShapeDtypeStruct((Bp, OUT), out_dtype),
        grid_spec=pl.GridSpec(
            grid=(Bp // batch_tile,),
            in_specs=[
                pl.BlockSpec((batch_tile, Z), lambda i: (i, 0)),  # x tile (unpadded Z)
                pl.BlockSpec((Z, Hp), lambda i: (0, 0)),          # W1 (VMEM-resident)
                pl.BlockSpec((1, Hp), lambda i: (0, 0)),          # b1
                pl.BlockSpec((Hp, OUT), lambda i: (0, 0)),        # W2 (VMEM-resident)
                pl.BlockSpec((1, OUT), lambda i: (0, 0)),         # b2
            ],
            out_specs=pl.BlockSpec((batch_tile, OUT), lambda i: (i, 0)),
        ),
        compiler_params=pltpu.CompilerParams(
            dimension_semantics=("parallel",),  # shards over both TCs on v7x
        ),
    )(xp, w1p, b1p, w2p, b2p)

    # Only slice if batch rows were padded (never for the common aligned case).
    return out if Bp == B else out[:B]


def init_generator_params(key, z=100, h=28, w=28, n=1, std=0.075 ** 2):
    """Deterministic synthetic params matching Generator.init_weights():
    every Linear weight and bias ~ Normal(0, std) with std = 0.075**2
    (normal_(mean, std) semantics)."""
    out_size = h * w * n
    k1, k2, k3, k4 = jax.random.split(key, 4)
    # Stored as (in_features, out_features) so the kernel computes x @ W,
    # equivalent to PyTorch's x @ weight.T with weight of shape (out, in).
    w1 = std * jax.random.normal(k1, (z, 128), dtype=jnp.float32)
    b1 = std * jax.random.normal(k2, (1, 128), dtype=jnp.float32)
    w2 = std * jax.random.normal(k3, (128, out_size), dtype=jnp.float32)
    b2 = std * jax.random.normal(k4, (1, out_size), dtype=jnp.float32)
    return w1, b1, w2, b2


if __name__ == "__main__":
    key = jax.random.PRNGKey(0)
    kx, kp = jax.random.split(key)

    # Module defaults: z=100, h=28, w=28, n=1 -> out_size=784. Small batch.
    Z, H_IMG, W_IMG, N_CH = 100, 28, 28, 1
    OUT = H_IMG * W_IMG * N_CH
    BATCH = 16

    x = jax.random.normal(kx, (BATCH, Z), dtype=jnp.float32)
    w1, b1, w2, b2 = init_generator_params(kp, z=Z, h=H_IMG, w=W_IMG, n=N_CH)

    # One-time parameter prep (pad + bf16 cast), outside the jitted forward.
    params = prepare_generator_params(w1, b1, w2, b2)

    out = generator_forward(x, *params)
    out = jax.block_until_ready(out)

    # Pure-JAX f32 reference of the same math (kernel uses bf16 matmul inputs
    # with f32 accumulation, so tolerance is loosened accordingly).
    ref = jax.nn.sigmoid(jnp.maximum(x @ w1 + b1, 0.0) @ w2 + b2)
    assert out.shape == (BATCH, OUT)
    assert jnp.allclose(out, ref, atol=5e-3, rtol=0), float(
        jnp.max(jnp.abs(out - ref)))

    print("KERNEL_OK")
</pallas_src>

<mosaic_0001>
module attributes {stable_mosaic.version = 11 : i64} {
  func.func @_generator_kernel(%arg0: i32, %arg1: memref<16x100xf32, #tpu.memory_space<vmem>>, %arg2: memref<100x128xbf16, #tpu.memory_space<vmem>>, %arg3: memref<1x128xf32, #tpu.memory_space<vmem>>, %arg4: memref<128x784xbf16, #tpu.memory_space<vmem>>, %arg5: memref<1x784xf32, #tpu.memory_space<vmem>>, %arg6: memref<16x784xf32, #tpu.memory_space<vmem>>) attributes {dimension_semantics = [#tpu.dimension_semantics<parallel>], iteration_bounds = array<i64: 1>, scalar_prefetch = 0 : i64, scratch_operands = 0 : i64, tpu.core_type = #tpu.core_type<tc>, window_params = [{transform_indices = @transform_0, window_bounds = array<i64: 16, 100>}, {pipeline_mode = #tpu.pipeline_mode<synchronous>, transform_indices = @transform_1, window_bounds = array<i64: 100, 128>}, {pipeline_mode = #tpu.pipeline_mode<synchronous>, transform_indices = @transform_2, window_bounds = array<i64: 1, 128>}, {pipeline_mode = #tpu.pipeline_mode<synchronous>, transform_indices = @transform_3, window_bounds = array<i64: 128, 784>}, {pipeline_mode = #tpu.pipeline_mode<synchronous>, transform_indices = @transform_4, window_bounds = array<i64: 1, 784>}, {transform_indices = @transform_5, window_bounds = array<i64: 16, 784>}]} {
    %c0 = arith.constant 0 : index
    %c0_0 = arith.constant 0 : index
    %0 = vector.load %arg1[%c0, %c0_0] : memref<16x100xf32, #tpu.memory_space<vmem>>, vector<16x100xf32>
    %1 = arith.truncf %0 : vector<16x100xf32> to vector<16x100xbf16>
    %c0_1 = arith.constant 0 : index
    %c0_2 = arith.constant 0 : index
    %2 = vector.load %arg2[%c0_1, %c0_2] : memref<100x128xbf16, #tpu.memory_space<vmem>>, vector<100x128xbf16>
    %cst = arith.constant dense<0.000000e+00> : vector<16x128xf32>
    %3 = tpu.matmul %1, %2, %cst {dimension_numbers = #tpu.dot_dimension_numbers<[1], [0], [0], [1], [0, 0, 1, 1], [], []>} : vector<16x100xbf16>, vector<100x128xbf16>, vector<16x128xf32> -> vector<16x128xf32>
    %c0_3 = arith.constant 0 : index
    %c0_4 = arith.constant 0 : index
    %4 = vector.load %arg3[%c0_3, %c0_4] : memref<1x128xf32, #tpu.memory_space<vmem>>, vector<1x128xf32>
    %5 = vector.broadcast %4 : vector<1x128xf32> to vector<16x128xf32>
    %6 = arith.addf %3, %5 : vector<16x128xf32>
    %cst_5 = arith.constant 0.000000e+00 : f32
    %7 = vector.broadcast %cst_5 : f32 to vector<16x128xf32>
    %8 = arith.maximumf %6, %7 : vector<16x128xf32>
    %9 = arith.truncf %8 : vector<16x128xf32> to vector<16x128xbf16>
    %c0_6 = arith.constant 0 : index
    %c0_7 = arith.constant 0 : index
    %10 = vector.load %arg4[%c0_6, %c0_7] : memref<128x784xbf16, #tpu.memory_space<vmem>>, vector<128x784xbf16>
    %cst_8 = arith.constant dense<0.000000e+00> : vector<16x784xf32>
    %11 = tpu.matmul %9, %10, %cst_8 {dimension_numbers = #tpu.dot_dimension_numbers<[1], [0], [0], [1], [0, 0, 1, 1], [], []>} : vector<16x128xbf16>, vector<128x784xbf16>, vector<16x784xf32> -> vector<16x784xf32>
    %c0_9 = arith.constant 0 : index
    %c0_10 = arith.constant 0 : index
    %12 = vector.load %arg5[%c0_9, %c0_10] : memref<1x784xf32, #tpu.memory_space<vmem>>, vector<1x784xf32>
    %13 = vector.broadcast %12 : vector<1x784xf32> to vector<16x784xf32>
    %14 = arith.addf %11, %13 : vector<16x784xf32>
    %cst_11 = arith.constant 5.000000e-01 : f32
    %15 = vector.broadcast %cst_11 : f32 to vector<16x784xf32>
    %16 = arith.mulf %15, %14 : vector<16x784xf32>
    %17 = math.tanh %16 : vector<16x784xf32>
    %cst_12 = arith.constant 1.000000e+00 : f32
    %18 = vector.broadcast %cst_12 : f32 to vector<16x784xf32>
    %19 = arith.addf %17, %18 : vector<16x784xf32>
    %cst_13 = arith.constant 5.000000e-01 : f32
    %20 = vector.broadcast %cst_13 : f32 to vector<16x784xf32>
    %21 = arith.mulf %20, %19 : vector<16x784xf32>
    %c0_14 = arith.constant 0 : index
    %c0_15 = arith.constant 0 : index
    %22 = vector.load %arg6[%c0_14, %c0_15] : memref<16x784xf32, #tpu.memory_space<vmem>>, vector<16x784xf32>
    tpu.vector_store %arg6[%c0_14, %c0_15], %21 {strides = array<i32>} : memref<16x784xf32, #tpu.memory_space<vmem>>, vector<16x784xf32>,
    return
  }
  func.func @transform_0(%arg0: i32) -> (i32, i32) {
    %c0_i32 = arith.constant 0 : i32
    %c0_i32_0 = arith.constant 0 : i32
    return %arg0, %c0_i32 : i32, i32
  }
  func.func @transform_1(%arg0: i32) -> (i32, i32) {
    %c0_i32 = arith.constant 0 : i32
    %c0_i32_0 = arith.constant 0 : i32
    %c0_i32_1 = arith.constant 0 : i32
    return %c0_i32, %c0_i32_0 : i32, i32
  }
  func.func @transform_2(%arg0: i32) -> (i32, i32) {
    %c0_i32 = arith.constant 0 : i32
    %c0_i32_0 = arith.constant 0 : i32
    %c0_i32_1 = arith.constant 0 : i32
    return %c0_i32, %c0_i32_0 : i32, i32
  }
  func.func @transform_3(%arg0: i32) -> (i32, i32) {
    %c0_i32 = arith.constant 0 : i32
    %c0_i32_0 = arith.constant 0 : i32
    %c0_i32_1 = arith.constant 0 : i32
    return %c0_i32, %c0_i32_0 : i32, i32
  }
  func.func @transform_4(%arg0: i32) -> (i32, i32) {
    %c0_i32 = arith.constant 0 : i32
    %c0_i32_0 = arith.constant 0 : i32
    %c0_i32_1 = arith.constant 0 : i32
    return %c0_i32, %c0_i32_0 : i32, i32
  }
  func.func @transform_5(%arg0: i32) -> (i32, i32) {
    %c0_i32 = arith.constant 0 : i32
    %c0_i32_0 = arith.constant 0 : i32
    return %arg0, %c0_i32 : i32, i32
  }
}

</mosaic_0001>

<llo_original>
// kernel: generator_forward.1
$region0: #{generator_forward.1}
  #allocation0 [shape = 'u32[]', space=smem, size = 0x4, offset = 0x4, fixed_abs, tag = 'smem constant byte address 0x4 - core index']
  #allocation1 [shape = 'u32[144,128]{1,0:T(1,128)}', space=vmem, size = 0x12000, scoped, tag = 'internal scratch']
  %s0 = inlined_call_operand.vmem [shape: f32[16,100], index: 0, kind: input, shape index: {}]
  %s1 = inlined_call_operand.vmem [shape: bf16[100,128], index: 1, kind: input, shape index: {}]
  %s2 = inlined_call_operand.vmem [shape: f32[1,128], index: 2, kind: input, shape index: {}]
  %s3 = inlined_call_operand.vmem [shape: bf16[128,784], index: 3, kind: input, shape index: {}]
  %s4 = inlined_call_operand.vmem [shape: f32[1,784], index: 4, kind: input, shape index: {}]
  %s5 = inlined_call_operand.hbm [shape: f32[16,784], index: 5, kind: output, shape index: {}]
  %s6 = sld [smem:[#allocation0]]
  $region30: #{generator_forward.1} parent=0
    _
  %s8 = ssub.s32 1, %s6
  %s9 = scalar_select 0, %s8, %s6
  $region1: #{generator_forward.1} parent=0
    #allocation2 [shape = 'u8[57344]{0}', space=vmem, size = 0xe000, scoped, tag = 'output window, operand 0, single buffered']
    #allocation3 [shape = 's32[1]{0}', space=sflag, size = 0x4, scoped, tag = 'scoped memory for generator_forward.1']
    %10 = vsyncpa [#allocation3], 0
    // Predicated region
    $region2: #{generator_forward.1} parent=1 // pred_check
      _
    $region3: #{generator_forward.1} parent=1 // pred_check_branch
      %12 = sbr.rel (0) target = $region5
    $region4: #{generator_forward.1} parent=1 // pred_region
      _
    $region5: #{generator_forward.1} parent=1 // pred_fallthru
      _
    // Predicated region
    $region6: #{generator_forward.1} parent=1 // pred_check
      _
    $region7: #{generator_forward.1} parent=1 // pred_check_branch
      %14 = sbr.rel (0) target = $region9
    $region8: #{generator_forward.1} parent=1 // pred_region
      _
    $region9: #{generator_forward.1} parent=1 // pred_fallthru
      _
    // Predicated region
    $region10: #{generator_forward.1} parent=1 // pred_check
      _
    $region11: #{generator_forward.1} parent=1 // pred_check_branch
      %16 = sbr.rel (0) target = $region13
    $region12: #{generator_forward.1} parent=1 // pred_region
      _
    $region13: #{generator_forward.1} parent=1 // pred_fallthru
      _
    // Predicated region
    $region14: #{generator_forward.1} parent=1 // pred_check
      _
    $region15: #{generator_forward.1} parent=1 // pred_check_branch
      %18 = sbr.rel (0) target = $region17
    $region16: #{generator_forward.1} parent=1 // pred_region
      _
    $region17: #{generator_forward.1} parent=1 // pred_fallthru
      _
    // Predicated region
    $region18: #{generator_forward.1} parent=1 // pred_check
      _
    $region19: #{generator_forward.1} parent=1 // pred_check_branch
      %20 = sbr.rel (0) target = $region21
    $region20: #{generator_forward.1} parent=1 // pred_region
      _
    $region21: #{generator_forward.1} parent=1 // pred_fallthru
      _
    %v22 = vld [vmem:[%s0] sm:$0xff]
    %v23 = vld [vmem:[%s0 + $0x8] sm:$0xff]
    %v24 = vpack.c.bf16 %v23, %v22
    %v25 = vld [vmem:[%s1] sm:$0xf]
    %v26 = vld [vmem:[%s1 + $0x4] sm:$0xf]
    %v27 = vld [vmem:[%s1 + $0x8] sm:$0xf]
    %v28 = vld [vmem:[%s1 + $0xc] sm:$0xf]
    %v29 = vld [vmem:[%s1 + $0x10] sm:$0xf]
    %v30 = vld [vmem:[%s1 + $0x14] sm:$0xf]
    %v31 = vld [vmem:[%s1 + $0x18] sm:$0xf]
    %v32 = vld [vmem:[%s1 + $0x1c] sm:$0xf]
    %v33 = vld [vmem:[%s1 + $0x20] sm:$0xf]
    %v34 = vld [vmem:[%s1 + $0x24] sm:$0xf]
    %v35 = vld [vmem:[%s1 + $0x28] sm:$0xf]
    %v36 = vld [vmem:[%s1 + $0x2c] sm:$0xf]
    %v37 = vld [vmem:[%s1 + $0x30] sm:$0x3]
    %v38 = vld [vmem:[%s2] sm:$0x1]
    %v40 = vlaneseq
    %v41 = vshrl.u32 %v40, 7
    %v42 = vsub.s32 0, %v41
    %v43 = vrot.slane %v38, %v42
    %v58 = vunpack.c.l.b16 %v25
    %v59 = vunpack.c.l.b16 %v26
    %v60 = vunpack.c.l.b16 %v27
    %v61 = vunpack.c.l.b16 %v28
    %v62 = vunpack.c.l.b16 %v29
    %v63 = vunpack.c.l.b16 %v30
    %v64 = vunpack.c.l.b16 %v31
    %v65 = vunpack.c.l.b16 %v32
    %v66 = vunpack.c.l.b16 %v33
    %v67 = vunpack.c.l.b16 %v34
    %v68 = vunpack.c.l.b16 %v35
    %v69 = vunpack.c.l.b16 %v36
    %v70 = vunpack.c.l.b16 %v37
    %v71 = vpack.c.b16 %v59, %v58
    %v72 = vpack.c.b16 %v61, %v60
    %v73 = vpack.c.b16 %v63, %v62
    %v74 = vpack.c.b16 %v65, %v64
    %v75 = vpack.c.b16 %v67, %v66
    %v76 = vpack.c.b16 %v69, %v68
    %v77 = vpack.c.b16 %v70, %v70
    %vm84 = vcmask 818176
    %v86 = vsel %vm84, %v24, 0
    %vm88 = vcmask 1041408
    %v90 = vsel %vm88, %v77, 0
    %92 = vmatprep.subr.bf16.mxu0 0
    %93 = vmatpush1.bf16.msra.mxu0 %v71
    %94 = vmatprep.subr.bf16.mxu0 0
    %95 = vmatpush1.bf16.msra.mxu0 %v72
    %96 = vmatprep.subr.bf16.mxu0 0
    %97 = vmatpush1.bf16.msra.mxu0 %v73
    %98 = vmatprep.subr.bf16.mxu0 0
    %99 = vmatpush1.bf16.msra.mxu0 %v74
    %100 = vmatprep.subr.bf16.mxu0 0
    %101 = vmatpush1.bf16.msra.mxu0 %v75
    %102 = vmatprep.subr.bf16.mxu0 0
    %103 = vmatpush1.bf16.msra.mxu0 %v76
    %104 = vmatprep.subr.bf16.mxu0 0
    %105 = vmatpush1.bf16.msra.mxu0 %v90
    %106 = vmatprep.subr.bf16.mxu0 0
    %107 = vmatpush1.bf16.msra.mxu0 0
    %108 = vmatprep.subr.bf16.mxu0 0
    %109 = vmatpush1.bf16.msra.mxu0 0
    %110 = vmatprep.subr.bf16.mxu0 0
    %111 = vmatpush1.bf16.msra.mxu0 0
    %112 = vmatprep.subr.bf16.mxu0 0
    %113 = vmatpush1.bf16.msra.mxu0 0
    %114 = vmatprep.subr.bf16.mxu0 0
    %115 = vmatpush1.bf16.msra.mxu0 0
    %116 = vmatprep.subr.bf16.mxu0 0
    %117 = vmatpush1.bf16.msra.mxu0 0
    %118 = vmatprep.subr.bf16.mxu0 0
    %119 = vmatpush1.bf16.msra.mxu0 0
    %120 = vmatprep.subr.bf16.mxu0 0
    %121 = vmatpush1.bf16.msra.mxu0 0
    %122 = vmatprep.subr.bf16.mxu0 0
    %123 = vmatpush1.bf16.msra.mxu0 0
    %124 = vmatprep.mubr.bf16.mxu0 0
    %125 = vmatmul.mubr.bf16.gmra.mrb[0].mxu0 %v86
    %v126 = vpop.f32.mrb[0].mxu0
    %v127 = vadd.f32 %v43, %v126
    %v128 = vpop.f32.mrb[0].mxu0
    %v129 = vpop.f32.mrb[0].mxu0
    %v130 = vadd.f32 %v43, %v129
    %v131 = vpop.f32.mrb[0].mxu0
    %132 = vdwg.mxu0
    %v133 = vmax.f32 %v127, 0.0
    %v134 = vmax.f32 %v130, 0.0
    %v135 = vpack.c.bf16 %v134, %v133
    %v136 = vld [vmem:[%s3] sm:$0xff]
    %v137 = vld [vmem:[%s3 + $0x8] sm:$0xff]
    %v138 = vld [vmem:[%s3 + $0x10] sm:$0xff]
    %v139 = vld [vmem:[%s3 + $0x18] sm:$0xf]
    %v140 = vld [vmem:[%s3 + $0x1c] sm:$0xff]
    %v141 = vld [vmem:[%s3 + $0x24] sm:$0xff]
    %v142 = vld [vmem:[%s3 + $0x2c] sm:$0xff]
    %v143 = vld [vmem:[%s3 + $0x34] sm:$0xf]
    %v144 = vld [vmem:[%s3 + $0x38] sm:$0xff]
    %v145 = vld [vmem:[%s3 + $0x40] sm:$0xff]
    %v146 = vld [vmem:[%s3 + $0x48] sm:$0xff]
    %v147 = vld [vmem:[%s3 + $0x50] sm:$0xf]
    %v148 = vld [vmem:[%s3 + $0x54] sm:$0xff]
    %v149 = vld [vmem:[%s3 + $0x5c] sm:$0xff]
    %v150 = vld [vmem:[%s3 + $0x64] sm:$0xff]
    %v151 = vld [vmem:[%s3 + $0x6c] sm:$0xf]
    %v152 = vld [vmem:[%s3 + $0x70] sm:$0xff]
    %v153 = vld [vmem:[%s3 + $0x78] sm:$0xff]
    %v154 = vld [vmem:[%s3 + $0x80] sm:$0xff]
    %v155 = vld [vmem:[%s3 + $0x88] sm:$0xf]
    %v156 = vld [vmem:[%s3 + $0x8c] sm:$0xff]
    %v157 = vld [vmem:[%s3 + $0x94] sm:$0xff]
    %v158 = vld [vmem:[%s3 + $0x9c] sm:$0xff]
    %v159 = vld [vmem:[%s3 + $0xa4] sm:$0xf]
    %v160 = vld [vmem:[%s3 + $0xa8] sm:$0xff]
    %v161 = vld [vmem:[%s3 + $0xb0] sm:$0xff]
    %v162 = vld [vmem:[%s3 + $0xb8] sm:$0xff]
    %v163 = vld [vmem:[%s3 + $0xc0] sm:$0xf]
    %v164 = vld [vmem:[%s3 + $0xc4] sm:$0xff]
    %v165 = vld [vmem:[%s3 + $0xcc] sm:$0xff]
    %v166 = vld [vmem:[%s3 + $0xd4] sm:$0xff]
    %v167 = vld [vmem:[%s3 + $0xdc] sm:$0xf]
    %v168 = vld [vmem:[%s3 + $0xe0] sm:$0xff]
    %v169 = vld [vmem:[%s3 + $0xe8] sm:$0xff]
    %v170 = vld [vmem:[%s3 + $0xf0] sm:$0xff]
    %v171 = vld [vmem:[%s3 + $0xf8] sm:$0xf]
    %v172 = vld [vmem:[%s3 + $0xfc] sm:$0xff]
    %v173 = vld [vmem:[%s3 + $0x104] sm:$0xff]
    %v174 = vld [vmem:[%s3 + $0x10c] sm:$0xff]
    %v175 = vld [vmem:[%s3 + $0x114] sm:$0xf]
    %v176 = vld [vmem:[%s3 + $0x118] sm:$0xff]
    %v177 = vld [vmem:[%s3 + $0x120] sm:$0xff]
    %v178 = vld [vmem:[%s3 + $0x128] sm:$0xff]
    %v179 = vld [vmem:[%s3 + $0x130] sm:$0xf]
    %v180 = vld [vmem:[%s3 + $0x134] sm:$0xff]
    %v181 = vld [vmem:[%s3 + $0x13c] sm:$0xff]
    %v182 = vld [vmem:[%s3 + $0x144] sm:$0xff]
    %v183 = vld [vmem:[%s3 + $0x14c] sm:$0xf]
    %v184 = vld [vmem:[%s3 + $0x150] sm:$0xff]
    %v185 = vld [vmem:[%s3 + $0x158] sm:$0xff]
    %v186 = vld [vmem:[%s3 + $0x160] sm:$0xff]
    %v187 = vld [vmem:[%s3 + $0x168] sm:$0xf]
    %v188 = vld [vmem:[%s3 + $0x16c] sm:$0xff]
    %v189 = vld [vmem:[%s3 + $0x174] sm:$0xff]
    %v190 = vld [vmem:[%s3 + $0x17c] sm:$0xff]
    %v191 = vld [vmem:[%s3 + $0x184] sm:$0xf]
    %v192 = vld [vmem:[%s3 + $0x188] sm:$0xff]
    %v193 = vld [vmem:[%s3 + $0x190] sm:$0xff]
    %v194 = vld [vmem:[%s3 + $0x198] sm:$0xff]
    %v195 = vld [vmem:[%s3 + $0x1a0] sm:$0xf]
    %v196 = vld [vmem:[%s3 + $0x1a4] sm:$0xff]
    %v197 = vld [vmem:[%s3 + $0x1ac] sm:$0xff]
    %v198 = vld [vmem:[%s3 + $0x1b4] sm:$0xff]
    %v199 = vld [vmem:[%s3 + $0x1bc] sm:$0xf]
    %v200 = vld [vmem:[%s4] sm:$0x7f]
    %v202 = vlaneseq
    %v203 = vshrl.u32 %v202, 7
    %v204 = vsub.s32 0, %v203
    %v205 = vrot.slane %v200, %v204
    %v206 = vlaneseq
    %v207 = vshrl.u32 %v206, 7
    %v208 = vsub.s32 1, %v207
    %v209 = vrot.slane %v200, %v208
    %v210 = vlaneseq
    %v211 = vshrl.u32 %v210, 7
    %v212 = vsub.s32 2, %v211
    %v213 = vrot.slane %v200, %v212
    %v214 = vlaneseq
    %v215 = vshrl.u32 %v214, 7
    %v216 = vsub.s32 3, %v215
    %v217 = vrot.slane %v200, %v216
    %v218 = vlaneseq
    %v219 = vshrl.u32 %v218, 7
    %v220 = vsub.s32 4, %v219
    %v221 = vrot.slane %v200, %v220
    %v222 = vlaneseq
    %v223 = vshrl.u32 %v222, 7
    %v224 = vsub.s32 5, %v223
    %v225 = vrot.slane %v200, %v224
    %v226 = vlaneseq
    %v227 = vshrl.u32 %v226, 7
    %v228 = vsub.s32 6, %v227
    %v229 = vrot.slane %v200, %v228
    %v301 = vunpack.c.l.b16 %v136
    %v302 = vunpack.c.h.b16 %v136
    %v303 = vunpack.c.l.b16 %v137
    %v304 = vunpack.c.h.b16 %v137
    %v305 = vunpack.c.l.b16 %v138
    %v306 = vunpack.c.h.b16 %v138
    %v307 = vunpack.c.l.b16 %v139
    %v308 = vunpack.c.l.b16 %v140
    %v309 = vunpack.c.h.b16 %v140
    %v310 = vunpack.c.l.b16 %v141
    %v311 = vunpack.c.h.b16 %v141
    %v312 = vunpack.c.l.b16 %v142
    %v313 = vunpack.c.h.b16 %v142
    %v314 = vunpack.c.l.b16 %v143
    %v315 = vunpack.c.l.b16 %v144
    %v316 = vunpack.c.h.b16 %v144
    %v317 = vunpack.c.l.b16 %v145
    %v318 = vunpack.c.h.b16 %v145
    %v319 = vunpack.c.l.b16 %v146
    %v320 = vunpack.c.h.b16 %v146
    %v321 = vunpack.c.l.b16 %v147
    %v322 = vunpack.c.l.b16 %v148
    %v323 = vunpack.c.h.b16 %v148
    %v324 = vunpack.c.l.b16 %v149
    %v325 = vunpack.c.h.b16 %v149
    %v326 = vunpack.c.l.b16 %v150
    %v327 = vunpack.c.h.b16 %v150
    %v328 = vunpack.c.l.b16 %v151
    %v329 = vunpack.c.l.b16 %v152
    %v330 = vunpack.c.h.b16 %v152
    %v331 = vunpack.c.l.b16 %v153
    %v332 = vunpack.c.h.b16 %v153
    %v333 = vunpack.c.l.b16 %v154
    %v334 = vunpack.c.h.b16 %v154
    %v335 = vunpack.c.l.b16 %v155
    %v336 = vunpack.c.l.b16 %v156
    %v337 = vunpack.c.h.b16 %v156
    %v338 = vunpack.c.l.b16 %v157
    %v339 = vunpack.c.h.b16 %v157
    %v340 = vunpack.c.l.b16 %v158
    %v341 = vunpack.c.h.b16 %v158
    %v342 = vunpack.c.l.b16 %v159
    %v343 = vunpack.c.l.b16 %v160
    %v344 = vunpack.c.h.b16 %v160
    %v345 = vunpack.c.l.b16 %v161
    %v346 = vunpack.c.h.b16 %v161
    %v347 = vunpack.c.l.b16 %v162
    %v348 = vunpack.c.h.b16 %v162
    %v349 = vunpack.c.l.b16 %v163
    %v350 = vunpack.c.l.b16 %v164
    %v351 = vunpack.c.h.b16 %v164
    %v352 = vunpack.c.l.b16 %v165
    %v353 = vunpack.c.h.b16 %v165
    %v354 = vunpack.c.l.b16 %v166
    %v355 = vunpack.c.h.b16 %v166
    %v356 = vunpack.c.l.b16 %v167
    %v357 = vunpack.c.l.b16 %v168
    %v358 = vunpack.c.h.b16 %v168
    %v359 = vunpack.c.l.b16 %v169
    %v360 = vunpack.c.h.b16 %v169
    %v361 = vunpack.c.l.b16 %v170
    %v362 = vunpack.c.h.b16 %v170
    %v363 = vunpack.c.l.b16 %v171
    %v364 = vunpack.c.l.b16 %v172
    %v365 = vunpack.c.h.b16 %v172
    %v366 = vunpack.c.l.b16 %v173
    %v367 = vunpack.c.h.b16 %v173
    %v368 = vunpack.c.l.b16 %v174
    %v369 = vunpack.c.h.b16 %v174
    %v370 = vunpack.c.l.b16 %v175
    %v371 = vunpack.c.l.b16 %v176
    %v372 = vunpack.c.h.b16 %v176
    %v373 = vunpack.c.l.b16 %v177
    %v374 = vunpack.c.h.b16 %v177
    %v375 = vunpack.c.l.b16 %v178
    %v376 = vunpack.c.h.b16 %v178
    %v377 = vunpack.c.l.b16 %v179
    %v378 = vunpack.c.l.b16 %v180
    %v379 = vunpack.c.h.b16 %v180
    %v380 = vunpack.c.l.b16 %v181
    %v381 = vunpack.c.h.b16 %v181
    %v382 = vunpack.c.l.b16 %v182
    %v383 = vunpack.c.h.b16 %v182
    %v384 = vunpack.c.l.b16 %v183
    %v385 = vunpack.c.l.b16 %v184
    %v386 = vunpack.c.h.b16 %v184
    %v387 = vunpack.c.l.b16 %v185
    %v388 = vunpack.c.h.b16 %v185
    %v389 = vunpack.c.l.b16 %v186
    %v390 = vunpack.c.h.b16 %v186
    %v391 = vunpack.c.l.b16 %v187
    %v392 = vunpack.c.l.b16 %v188
    %v393 = vunpack.c.h.b16 %v188
    %v394 = vunpack.c.l.b16 %v189
    %v395 = vunpack.c.h.b16 %v189
    %v396 = vunpack.c.l.b16 %v190
    %v397 = vunpack.c.h.b16 %v190
    %v398 = vunpack.c.l.b16 %v191
    %v399 = vunpack.c.l.b16 %v192
    %v400 = vunpack.c.h.b16 %v192
    %v401 = vunpack.c.l.b16 %v193
    %v402 = vunpack.c.h.b16 %v193
    %v403 = vunpack.c.l.b16 %v194
    %v404 = vunpack.c.h.b16 %v194
    %v405 = vunpack.c.l.b16 %v195
    %v406 = vunpack.c.l.b16 %v196
    %v407 = vunpack.c.h.b16 %v196
    %v408 = vunpack.c.l.b16 %v197
    %v409 = vunpack.c.h.b16 %v197
    %v410 = vunpack.c.l.b16 %v198
    %v411 = vunpack.c.h.b16 %v198
    %v412 = vunpack.c.l.b16 %v199
    %v413 = vpack.c.b16 %v308, %v301
    %v414 = vpack.c.b16 %v309, %v302
    %v415 = vpack.c.b16 %v310, %v303
    %v416 = vpack.c.b16 %v311, %v304
    %v417 = vpack.c.b16 %v312, %v305
    %v418 = vpack.c.b16 %v313, %v306
    %v419 = vpack.c.b16 %v314, %v307
    %v420 = vpack.c.b16 %v322, %v315
    %v421 = vpack.c.b16 %v323, %v316
    %v422 = vpack.c.b16 %v324, %v317
    %v423 = vpack.c.b16 %v325, %v318
    %v424 = vpack.c.b16 %v326, %v319
    %v425 = vpack.c.b16 %v327, %v320
    %v426 = vpack.c.b16 %v328, %v321
    %v427 = vpack.c.b16 %v336, %v329
    %v428 = vpack.c.b16 %v337, %v330
    %v429 = vpack.c.b16 %v338, %v331
    %v430 = vpack.c.b16 %v339, %v332
    %v431 = vpack.c.b16 %v340, %v333
    %v432 = vpack.c.b16 %v341, %v334
    %v433 = vpack.c.b16 %v342, %v335
    %v434 = vpack.c.b16 %v350, %v343
    %v435 = vpack.c.b16 %v351, %v344
    %v436 = vpack.c.b16 %v352, %v345
    %v437 = vpack.c.b16 %v353, %v346
    %v438 = vpack.c.b16 %v354, %v347
    %v439 = vpack.c.b16 %v355, %v348
    %v440 = vpack.c.b16 %v356, %v349
    %v441 = vpack.c.b16 %v364, %v357
    %v442 = vpack.c.b16 %v365, %v358
    %v443 = vpack.c.b16 %v366, %v359
    %v444 = vpack.c.b16 %v367, %v360
    %v445 = vpack.c.b16 %v368, %v361
    %v446 = vpack.c.b16 %v369, %v362
    %v447 = vpack.c.b16 %v370, %v363
    %v448 = vpack.c.b16 %v378, %v371
    %v449 = vpack.c.b16 %v379, %v372
    %v450 = vpack.c.b16 %v380, %v373
    %v451 = vpack.c.b16 %v381, %v374
    %v452 = vpack.c.b16 %v382, %v375
    %v453 = vpack.c.b16 %v383, %v376
    %v454 = vpack.c.b16 %v384, %v377
    %v455 = vpack.c.b16 %v392, %v385
    %v456 = vpack.c.b16 %v393, %v386
    %v457 = vpack.c.b16 %v394, %v387
    %v458 = vpack.c.b16 %v395, %v388
    %v459 = vpack.c.b16 %v396, %v389
    %v460 = vpack.c.b16 %v397, %v390
    %v461 = vpack.c.b16 %v398, %v391
    %v462 = vpack.c.b16 %v406, %v399
    %v463 = vpack.c.b16 %v407, %v400
    %v464 = vpack.c.b16 %v408, %v401
    %v465 = vpack.c.b16 %v409, %v402
    %v466 = vpack.c.b16 %v410, %v403
    %v467 = vpack.c.b16 %v411, %v404
    %v468 = vpack.c.b16 %v412, %v405
    %525 = vmatprep.subr.bf16.mxu0 %v414
    %526 = vmatpush1.bf16.msra.mxu0 %v413
    %527 = vmatprep.subr.bf16.mxu0 %v421
    %528 = vmatpush1.bf16.msra.mxu0 %v420
    %529 = vmatprep.subr.bf16.mxu0 %v428
    %530 = vmatpush1.bf16.msra.mxu0 %v427
    %531 = vmatprep.subr.bf16.mxu0 %v435
    %532 = vmatpush1.bf16.msra.mxu0 %v434
    %533 = vmatprep.subr.bf16.mxu0 %v442
    %534 = vmatpush1.bf16.msra.mxu0 %v441
    %535 = vmatprep.subr.bf16.mxu0 %v449
    %536 = vmatpush1.bf16.msra.mxu0 %v448
    %537 = vmatprep.subr.bf16.mxu0 %v456
    %538 = vmatpush1.bf16.msra.mxu0 %v455
    %539 = vmatprep.subr.bf16.mxu0 %v463
    %540 = vmatpush1.bf16.msra.mxu0 %v462
    %541 = vmatprep.subr.bf16.mxu0 0
    %542 = vmatpush1.bf16.msra.mxu0 0
    %543 = vmatprep.subr.bf16.mxu0 0
    %544 = vmatpush1.bf16.msra.mxu0 0
    %545 = vmatprep.subr.bf16.mxu0 0
    %546 = vmatpush1.bf16.msra.mxu0 0
    %547 = vmatprep.subr.bf16.mxu0 0
    %548 = vmatpush1.bf16.msra.mxu0 0
    %549 = vmatprep.subr.bf16.mxu0 0
    %550 = vmatpush1.bf16.msra.mxu0 0
    %551 = vmatprep.subr.bf16.mxu0 0
    %552 = vmatpush1.bf16.msra.mxu0 0
    %553 = vmatprep.subr.bf16.mxu0 0
    %554 = vmatpush1.bf16.msra.mxu0 0
    %555 = vmatprep.subr.bf16.mxu0 0
    %556 = vmatpush1.bf16.msra.mxu0 0
    %557 = vmatprep.mubr.bf16.mxu0 0
    %558 = vmatmul.mubr.bf16.gmra.mrb[0].mxu0 %v135
    %v559 = vpop.f32.mrb[0].mxu0
    %v560 = vadd.f32 %v205, %v559
    %v561 = vpop.f32.mrb[0].mxu0
    %v562 = vadd.f32 %v209, %v561
    %v563 = vpop.f32.mrb[0].mxu0
    %v564 = vadd.f32 %v205, %v563
    %v565 = vpop.f32.mrb[0].mxu0
    %v566 = vadd.f32 %v209, %v565
    %567 = vdwg.mxu0
    %568 = vmatprep.subr.bf16.mxu0 %v416
    %569 = vmatpush1.bf16.msra.mxu0 %v415
    %570 = vmatprep.subr.bf16.mxu0 %v423
    %571 = vmatpush1.bf16.msra.mxu0 %v422
    %572 = vmatprep.subr.bf16.mxu0 %v430
    %573 = vmatpush1.bf16.msra.mxu0 %v429
    %574 = vmatprep.subr.bf16.mxu0 %v437
    %575 = vmatpush1.bf16.msra.mxu0 %v436
    %576 = vmatprep.subr.bf16.mxu0 %v444
    %577 = vmatpush1.bf16.msra.mxu0 %v443
    %578 = vmatprep.subr.bf16.mxu0 %v451
    %579 = vmatpush1.bf16.msra.mxu0 %v450
    %580 = vmatprep.subr.bf16.mxu0 %v458
    %581 = vmatpush1.bf16.msra.mxu0 %v457
    %582 = vmatprep.subr.bf16.mxu0 %v465
    %583 = vmatpush1.bf16.msra.mxu0 %v464
    %584 = vmatprep.subr.bf16.mxu0 0
    %585 = vmatpush1.bf16.msra.mxu0 0
    %586 = vmatprep.subr.bf16.mxu0 0
    %587 = vmatpush1.bf16.msra.mxu0 0
    %588 = vmatprep.subr.bf16.mxu0 0
    %589 = vmatpush1.bf16.msra.mxu0 0
    %590 = vmatprep.subr.bf16.mxu0 0
    %591 = vmatpush1.bf16.msra.mxu0 0
    %592 = vmatprep.subr.bf16.mxu0 0
    %593 = vmatpush1.bf16.msra.mxu0 0
    %594 = vmatprep.subr.bf16.mxu0 0
    %595 = vmatpush1.bf16.msra.mxu0 0
    %596 = vmatprep.subr.bf16.mxu0 0
    %597 = vmatpush1.bf16.msra.mxu0 0
    %598 = vmatprep.subr.bf16.mxu0 0
    %599 = vmatpush1.bf16.msra.mxu0 0
    %600 = vmatprep.mubr.bf16.mxu0 0
    %601 = vmatmul.mubr.bf16.gmra.mrb[0].mxu0 %v135
    %v602 = vpop.f32.mrb[0].mxu0
    %v603 = vadd.f32 %v213, %v602
    %v604 = vpop.f32.mrb[0].mxu0
    %v605 = vadd.f32 %v217, %v604
    %v606 = vpop.f32.mrb[0].mxu0
    %v607 = vadd.f32 %v213, %v606
    %v608 = vpop.f32.mrb[0].mxu0
    %v609 = vadd.f32 %v217, %v608
    %610 = vdwg.mxu0
    %611 = vmatprep.subr.bf16.mxu0 %v418
    %612 = vmatpush1.bf16.msra.mxu0 %v417
    %613 = vmatprep.subr.bf16.mxu0 %v425
    %614 = vmatpush1.bf16.msra.mxu0 %v424
    %615 = vmatprep.subr.bf16.mxu0 %v432
    %616 = vmatpush1.bf16.msra.mxu0 %v431
    %617 = vmatprep.subr.bf16.mxu0 %v439
    %618 = vmatpush1.bf16.msra.mxu0 %v438
    %619 = vmatprep.subr.bf16.mxu0 %v446
    %620 = vmatpush1.bf16.msra.mxu0 %v445
    %621 = vmatprep.subr.bf16.mxu0 %v453
    %622 = vmatpush1.bf16.msra.mxu0 %v452
    %623 = vmatprep.subr.bf16.mxu0 %v460
    %624 = vmatpush1.bf16.msra.mxu0 %v459
    %625 = vmatprep.subr.bf16.mxu0 %v467
    %626 = vmatpush1.bf16.msra.mxu0 %v466
    %627 = vmatprep.subr.bf16.mxu0 0
    %628 = vmatpush1.bf16.msra.mxu0 0
    %629 = vmatprep.subr.bf16.mxu0 0
    %630 = vmatpush1.bf16.msra.mxu0 0
    %631 = vmatprep.subr.bf16.mxu0 0
    %632 = vmatpush1.bf16.msra.mxu0 0
    %633 = vmatprep.subr.bf16.mxu0 0
    %634 = vmatpush1.bf16.msra.mxu0 0
    %635 = vmatprep.subr.bf16.mxu0 0
    %636 = vmatpush1.bf16.msra.mxu0 0
    %637 = vmatprep.subr.bf16.mxu0 0
    %638 = vmatpush1.bf16.msra.mxu0 0
    %639 = vmatprep.subr.bf16.mxu0 0
    %640 = vmatpush1.bf16.msra.mxu0 0
    %641 = vmatprep.subr.bf16.mxu0 0
    %642 = vmatpush1.bf16.msra.mxu0 0
    %643 = vmatprep.mubr.bf16.mxu0 0
    %644 = vmatmul.mubr.bf16.gmra.mrb[0].mxu0 %v135
    %v645 = vpop.f32.mrb[0].mxu0
    %v646 = vadd.f32 %v221, %v645
    %v647 = vpop.f32.mrb[0].mxu0
    %v648 = vadd.f32 %v225, %v647
    %v649 = vpop.f32.mrb[0].mxu0
    %v650 = vadd.f32 %v221, %v649
    %v651 = vpop.f32.mrb[0].mxu0
    %v652 = vadd.f32 %v225, %v651
    %653 = vdwg.mxu0
    %654 = vmatprep.subr.bf16.mxu0 0
    %655 = vmatpush1.bf16.msra.mxu0 %v419
    %656 = vmatprep.subr.bf16.mxu0 0
    %657 = vmatpush1.bf16.msra.mxu0 %v426
    %658 = vmatprep.subr.bf16.mxu0 0
    %659 = vmatpush1.bf16.msra.mxu0 %v433
    %660 = vmatprep.subr.bf16.mxu0 0
    %661 = vmatpush1.bf16.msra.mxu0 %v440
    %662 = vmatprep.subr.bf16.mxu0 0
    %663 = vmatpush1.bf16.msra.mxu0 %v447
    %664 = vmatprep.subr.bf16.mxu0 0
    %665 = vmatpush1.bf16.msra.mxu0 %v454
    %666 = vmatprep.subr.bf16.mxu0 0
    %667 = vmatpush1.bf16.msra.mxu0 %v461
    %668 = vmatprep.subr.bf16.mxu0 0
    %669 = vmatpush1.bf16.msra.mxu0 %v468
    %670 = vmatprep.subr.bf16.mxu0 0
    %671 = vmatpush1.bf16.msra.mxu0 0
    %672 = vmatprep.subr.bf16.mxu0 0
    %673 = vmatpush1.bf16.msra.mxu0 0
    %674 = vmatprep.subr.bf16.mxu0 0
    %675 = vmatpush1.bf16.msra.mxu0 0
    %676 = vmatprep.subr.bf16.mxu0 0
    %677 = vmatpush1.bf16.msra.mxu0 0
    %678 = vmatprep.subr.bf16.mxu0 0
    %679 = vmatpush1.bf16.msra.mxu0 0
    %680 = vmatprep.subr.bf16.mxu0 0
    %681 = vmatpush1.bf16.msra.mxu0 0
    %682 = vmatprep.subr.bf16.mxu0 0
    %683 = vmatpush1.bf16.msra.mxu0 0
    %684 = vmatprep.subr.bf16.mxu0 0
    %685 = vmatpush1.bf16.msra.mxu0 0
    %686 = vmatprep.mubr.bf16.mxu0 0
    %687 = vmatmul.mubr.bf16.gmra.mrb[0].mxu0 %v135
    %v688 = vpop.f32.mrb[0].mxu0
    %v689 = vadd.f32 %v229, %v688
    %v690 = vpop.f32.mrb[0].mxu0
    %v691 = vpop.f32.mrb[0].mxu0
    %v692 = vadd.f32 %v229, %v691
    %v693 = vpop.f32.mrb[0].mxu0
    %694 = vdwg.mxu0
    %v695 = vmul.f32 %v560, 0.5
    %v696 = vmul.f32 %v562, 0.5
    %v697 = vmul.f32 %v603, 0.5
    %v698 = vmul.f32 %v605, 0.5
    %v699 = vmul.f32 %v646, 0.5
    %v700 = vmul.f32 %v648, 0.5
    %v701 = vmul.f32 %v689, 0.5
    %v702 = vmul.f32 %v564, 0.5
    %v703 = vmul.f32 %v566, 0.5
    %v704 = vmul.f32 %v607, 0.5
    %v705 = vmul.f32 %v609, 0.5
    %v706 = vmul.f32 %v650, 0.5
    %v707 = vmul.f32 %v652, 0.5
    %v708 = vmul.f32 %v692, 0.5
    %v709 = vtanh.pop %v695
    %v710 = vtanh.pop %v696
    %v711 = vtanh.pop %v697
    %v712 = vtanh.pop %v698
    %v713 = vtanh.pop %v699
    %v714 = vtanh.pop %v700
    %v715 = vtanh.pop %v701
    %v716 = vtanh.pop %v702
    %v717 = vtanh.pop %v703
    %v718 = vtanh.pop %v704
    %v719 = vtanh.pop %v705
    %v720 = vtanh.pop %v706
    %v721 = vtanh.pop %v707
    %v722 = vtanh.pop %v708
    %v723 = vadd.f32 %v709, 1.0
    %v724 = vadd.f32 %v710, 1.0
    %v725 = vadd.f32 %v711, 1.0
    %v726 = vadd.f32 %v712, 1.0
    %v727 = vadd.f32 %v713, 1.0
    %v728 = vadd.f32 %v714, 1.0
    %v729 = vadd.f32 %v715, 1.0
    %v730 = vadd.f32 %v716, 1.0
    %v731 = vadd.f32 %v717, 1.0
    %v732 = vadd.f32 %v718, 1.0
    %v733 = vadd.f32 %v719, 1.0
    %v734 = vadd.f32 %v720, 1.0
    %v735 = vadd.f32 %v721, 1.0
    %v736 = vadd.f32 %v722, 1.0
    %v737 = vmul.f32 %v723, 0.5
    %v738 = vmul.f32 %v724, 0.5
    %v739 = vmul.f32 %v725, 0.5
    %v740 = vmul.f32 %v726, 0.5
    %v741 = vmul.f32 %v727, 0.5
    %v742 = vmul.f32 %v728, 0.5
    %v743 = vmul.f32 %v729, 0.5
    %v744 = vmul.f32 %v730, 0.5
    %v745 = vmul.f32 %v731, 0.5
    %v746 = vmul.f32 %v732, 0.5
    %v747 = vmul.f32 %v733, 0.5
    %v748 = vmul.f32 %v734, 0.5
    %v749 = vmul.f32 %v735, 0.5
    %v750 = vmul.f32 %v736, 0.5
    %751 = vst [vmem:[#allocation2] sm:$0xff] %v737
    %752 = vst [vmem:[#allocation2 + $0x8] sm:$0xff] %v738
    %753 = vst [vmem:[#allocation2 + $0x10] sm:$0xff] %v739
    %754 = vst [vmem:[#allocation2 + $0x18] sm:$0xff] %v740
    %755 = vst [vmem:[#allocation2 + $0x20] sm:$0xff] %v741
    %756 = vst [vmem:[#allocation2 + $0x28] sm:$0xff] %v742
    %vm757 = vcmask 130048
    %758 = vst.msk [vmem:[#allocation2 + $0x30] sm:$0xff] %vm757, %v743
    %759 = vst [vmem:[#allocation2 + $0x38] sm:$0xff] %v744
    %760 = vst [vmem:[#allocation2 + $0x40] sm:$0xff] %v745
    %761 = vst [vmem:[#allocation2 + $0x48] sm:$0xff] %v746
    %762 = vst [vmem:[#allocation2 + $0x50] sm:$0xff] %v747
    %763 = vst [vmem:[#allocation2 + $0x58] sm:$0xff] %v748
    %764 = vst [vmem:[#allocation2 + $0x60] sm:$0xff] %v749
    %765 = vst.msk [vmem:[#allocation2 + $0x68] sm:$0xff] %vm757, %v750
    // Predicated region
    $region22: #{generator_forward.1} parent=1 // pred_check
      _
    $region23: #{generator_forward.1} parent=1 // pred_check_branch
      %767 = sbr.rel (0) target = $region25
    $region24: #{generator_forward.1} parent=1 // pred_region
      %s769 = ssub.s32 1792, 1792
      %770 = vsyncadd [#allocation3], %s769
      %s771 = sshll.u32 [#allocation2], 4
      %s772 = int_to_ptr.vmem [resolvable:$true] %s771
      %777 = dma.vmem_to_hbm [thread:$0]  %s772, 1792, %s5, [#allocation3], 896, 896, 56
    $region25: #{generator_forward.1} parent=1 // pred_fallthru
      _
    // Predicated region
    $region26: #{generator_forward.1} parent=1 // pred_check
      _
    $region27: #{generator_forward.1} parent=1 // pred_check_branch
      %779 = sbr.rel (0) target = $region29
    $region28: #{generator_forward.1} parent=1 // pred_region
      %780 = dma.done [#allocation3], 1792
    $region29: #{generator_forward.1} parent=1 // pred_fallthru
      _
    %781 = vsyncpa [#allocation3], 1

</llo_original>
